<compile_context>
chip_gen: v6e
topology: v6e:2x2x1
jax: 0.10.0
libtpu: 0.0.40
codegen_flags: <defaults>
</compile_context>

<pallas_src>
import functools

import jax
import jax.numpy as jnp
from jax.experimental import pallas as pl
from jax.experimental.pallas import tpu as pltpu

LAYERS = [32, 32, 32, 32]   # hidden sizes from the PyTorch module
IN_DIM = 3
OUT_DIM = 1
HID = 32
IN_PAD = 8                  # input feature dim padded 3 -> 8 (sublane aligned)
ONES_ROW = IN_DIM           # row of the padded input slab that holds the constant 1.0


def pinn_kernel(x_ref, w0_ref, w_ref, b_ref, o_ref, *, compute_dtype):
    """Full 5-layer MLP on one batch tile, batch on lanes.

      x_ref : (IN_PAD, tile_n)  transposed inputs; row 3 is all-ones (bias-0 fold),
                                rows 4..7 are zero padding
      w0_ref: (HID, IN_PAD)     layer-0 weight (out,in); col 3 holds b0, cols 4..7 zero
      w_ref : (4, HID, HID)     layers 1..3 and the output layer (padded (1,32)->(32,32))
      b_ref : (4, HID, 1)       biases of layers 1..3 and the output layer
      o_ref : (1, tile_n)       lane-dense output row
    """
    h = x_ref[...]                                               # (IN_PAD, tile_n)

    # layer 0: tanh(W0 @ [x; 1; 0...]) -> (HID, tile_n); bias already folded into W0
    acc = jnp.dot(w0_ref[...], h, preferred_element_type=jnp.float32)
    h = jnp.tanh(acc.astype(compute_dtype))

    # hidden layers 1..3
    for l in range(3):
        acc = jnp.dot(w_ref[l], h, preferred_element_type=jnp.float32) + b_ref[l]
        h = jnp.tanh(acc.astype(compute_dtype))

    # output layer: linear; weight padded to (32,32) so only row 0 is real
    acc = jnp.dot(w_ref[3], h, preferred_element_type=jnp.float32) + b_ref[3]
    o_ref[...] = acc[0:1, :].astype(o_ref.dtype)


def init_params(key):
    """PyTorch nn.Linear default init: W is (out, in), b is (out,),
    both ~ U(-1/sqrt(fan_in), 1/sqrt(fan_in))."""
    dims = [IN_DIM] + LAYERS + [OUT_DIM]      # [3, 32, 32, 32, 32, 1]
    params = []
    for i in range(len(dims) - 1):
        fan_in, fan_out = dims[i], dims[i + 1]
        bound = 1.0 / float(fan_in) ** 0.5
        key, kw, kb = jax.random.split(key, 3)
        w = jax.random.uniform(kw, (fan_out, fan_in), jnp.float32, -bound, bound)
        b = jax.random.uniform(kb, (fan_out,), jnp.float32, -bound, bound)
        params.append((w, b))
    return params


def pack_params(params, compute_dtype):
    """Pack the 10 per-layer tensors into 3 resident, MXU/DMA-friendly buffers."""
    w0, b0 = params[0]                                           # (32, 3), (32,)
    w0p = jnp.zeros((HID, IN_PAD), compute_dtype)
    w0p = w0p.at[:, :IN_DIM].set(w0.astype(compute_dtype))
    w0p = w0p.at[:, ONES_ROW].set(b0.astype(compute_dtype))      # fold b0 into W0

    w_rest = jnp.zeros((4, HID, HID), compute_dtype)
    for i in range(1, 4):                                        # layers 1..3: (32, 32)
        w_rest = w_rest.at[i - 1].set(params[i][0].astype(compute_dtype))
    w_rest = w_rest.at[3, :OUT_DIM, :].set(                      # output layer: (1, 32)
        params[4][0].astype(compute_dtype))

    b_all = jnp.zeros((4, HID, 1), jnp.float32)
    for i in range(1, 4):
        b_all = b_all.at[i - 1, :, 0].set(params[i][1])
    b_all = b_all.at[3, :OUT_DIM, 0].set(params[4][1])
    return w0p, w_rest, b_all


def pinn_forward(x, params, tile_n=1024, compute_dtype=jnp.float32):
    """x: (N, 3) float32, any N. Returns (N, 1) float32.

    Batch is mapped to lanes; N is padded up to a multiple of tile_n in the
    wrapper and the padded rows are sliced off before returning.  VMEM footprint
    per step is tiny (double-buffered x tile: 2*8*tile_n*4 B, ~17 KiB of resident
    packed weights), so tile_n can be raised freely to amortize per-step overhead.
    On v6e/v7x, compute_dtype=jnp.bfloat16 speeds up tanh/matmul (f32 accumulate);
    keep f32 on v5e or when PINN-gradient accuracy matters.
    """
    assert tile_n % 128 == 0, "tile_n must be a multiple of 128 (lane width)"
    n = x.shape[0]
    n_tiles = pl.cdiv(n, tile_n)
    n_pad = n_tiles * tile_n

    # transposed, sublane-padded input slab:
    #   rows 0..2 hold x^T, row 3 is all-ones (layer-0 bias fold), rows 4..7 zero
    xt = jnp.zeros((IN_PAD, n_pad), compute_dtype)
    xt = xt.at[:IN_DIM, :n].set(x.T.astype(compute_dtype))
    xt = xt.at[ONES_ROW, :].set(jnp.asarray(1.0, compute_dtype))
    w0p, w_rest, b_all = pack_params(params, compute_dtype)

    out = pl.pallas_call(
        functools.partial(pinn_kernel, compute_dtype=compute_dtype),
        out_shape=jax.ShapeDtypeStruct((1, n_pad), jnp.float32),
        grid_spec=pltpu.PrefetchScalarGridSpec(
            num_scalar_prefetch=0,
            grid=(n_tiles,),
            in_specs=[
                pl.BlockSpec((IN_PAD, tile_n), lambda i: (0, i)),   # x tile (lanes=batch)
                pl.BlockSpec((HID, IN_PAD), lambda i: (0, 0)),      # layer-0 weight (+b0)
                pl.BlockSpec((4, HID, HID), lambda i: (0, 0, 0)),   # packed weights
                pl.BlockSpec((4, HID, 1), lambda i: (0, 0, 0)),     # packed biases
            ],
            out_specs=pl.BlockSpec((1, tile_n), lambda i: (0, i)),  # lane-dense output
        ),
        compiler_params=pltpu.CompilerParams(
            dimension_semantics=("parallel",)),
    )(xt, w0p, w_rest, b_all)

    return out[0, :n][:, None]


def pinn_forward_ref(x, params):
    """Pure-JAX reference matching the PyTorch forward (weights are (out, in))."""
    h = x
    for w, b in params[:-1]:
        h = jnp.tanh(h @ w.T + b)
    w, b = params[-1]
    return h @ w.T + b


if __name__ == "__main__":
    key = jax.random.PRNGKey(0)
    kp, kx = jax.random.split(key)

    params = init_params(kp)

    # collocation points (x, y, t); deliberately not a multiple of tile_n so the
    # padding/remainder path is exercised, and >1 grid step for megacore sharding.
    N = 1000
    x = jax.random.uniform(kx, (N, IN_DIM), jnp.float32, minval=-1.0, maxval=1.0)

    out = pinn_forward(x, params, tile_n=512)
    out = jax.block_until_ready(out)

    ref = pinn_forward_ref(x, params)
    assert out.shape == (N, OUT_DIM)
    assert jnp.allclose(out, ref, atol=3e-5, rtol=3e-5), float(
        jnp.max(jnp.abs(out - ref)))

    print("KERNEL_OK")
</pallas_src>

<mosaic_0001>
module attributes {stable_mosaic.version = 11 : i64} {
  func.func @pinn_kernel(%arg0: i32, %arg1: memref<8x512xf32, #tpu.memory_space<vmem>>, %arg2: memref<32x8xf32, #tpu.memory_space<vmem>>, %arg3: memref<4x32x32xf32, #tpu.memory_space<vmem>>, %arg4: memref<4x32x1xf32, #tpu.memory_space<vmem>>, %arg5: memref<1x512xf32, #tpu.memory_space<vmem>>) attributes {dimension_semantics = [#tpu.dimension_semantics<parallel>], iteration_bounds = array<i64: 2>, scalar_prefetch = 0 : i64, scratch_operands = 0 : i64, tpu.core_type = #tpu.core_type<tc>, window_params = [{transform_indices = @transform_0, window_bounds = array<i64: 8, 512>}, {pipeline_mode = #tpu.pipeline_mode<synchronous>, transform_indices = @transform_1, window_bounds = array<i64: 32, 8>}, {pipeline_mode = #tpu.pipeline_mode<synchronous>, transform_indices = @transform_2, window_bounds = array<i64: 4, 32, 32>}, {pipeline_mode = #tpu.pipeline_mode<synchronous>, transform_indices = @transform_3, window_bounds = array<i64: 4, 32, 1>}, {transform_indices = @transform_4, window_bounds = array<i64: 1, 512>}]} {
    %c0 = arith.constant 0 : index
    %c0_0 = arith.constant 0 : index
    %0 = vector.load %arg1[%c0, %c0_0] : memref<8x512xf32, #tpu.memory_space<vmem>>, vector<8x512xf32>
    %c0_1 = arith.constant 0 : index
    %c0_2 = arith.constant 0 : index
    %1 = vector.load %arg2[%c0_1, %c0_2] : memref<32x8xf32, #tpu.memory_space<vmem>>, vector<32x8xf32>
    %cst = arith.constant dense<0.000000e+00> : vector<32x512xf32>
    %2 = tpu.matmul %1, %0, %cst {dimension_numbers = #tpu.dot_dimension_numbers<[1], [0], [0], [1], [0, 0, 1, 1], [], []>} : vector<32x8xf32>, vector<8x512xf32>, vector<32x512xf32> -> vector<32x512xf32>
    %3 = math.tanh %2 : vector<32x512xf32>
    %c0_3 = arith.constant 0 : index
    %c0_4 = arith.constant 0 : index
    %c0_5 = arith.constant 0 : index
    %4 = vector.load %arg3[%c0_3, %c0_4, %c0_5] : memref<4x32x32xf32, #tpu.memory_space<vmem>>, vector<1x32x32xf32>
    %5 = vector.shape_cast %4 : vector<1x32x32xf32> to vector<32x32xf32>
    %cst_6 = arith.constant dense<0.000000e+00> : vector<32x512xf32>
    %6 = tpu.matmul %5, %3, %cst_6 {dimension_numbers = #tpu.dot_dimension_numbers<[1], [0], [0], [1], [0, 0, 1, 1], [], []>} : vector<32x32xf32>, vector<32x512xf32>, vector<32x512xf32> -> vector<32x512xf32>
    %c0_7 = arith.constant 0 : index
    %c0_8 = arith.constant 0 : index
    %c0_9 = arith.constant 0 : index
    %7 = vector.load %arg4[%c0_7, %c0_8, %c0_9] : memref<4x32x1xf32, #tpu.memory_space<vmem>>, vector<1x32x1xf32>
    %8 = vector.shape_cast %7 : vector<1x32x1xf32> to vector<32x1xf32>
    %9 = vector.broadcast %8 : vector<32x1xf32> to vector<32x512xf32>
    %10 = arith.addf %6, %9 : vector<32x512xf32>
    %11 = math.tanh %10 : vector<32x512xf32>
    %c1 = arith.constant 1 : index
    %c0_10 = arith.constant 0 : index
    %c0_11 = arith.constant 0 : index
    %12 = vector.load %arg3[%c1, %c0_10, %c0_11] : memref<4x32x32xf32, #tpu.memory_space<vmem>>, vector<1x32x32xf32>
    %13 = vector.shape_cast %12 : vector<1x32x32xf32> to vector<32x32xf32>
    %cst_12 = arith.constant dense<0.000000e+00> : vector<32x512xf32>
    %14 = tpu.matmul %13, %11, %cst_12 {dimension_numbers = #tpu.dot_dimension_numbers<[1], [0], [0], [1], [0, 0, 1, 1], [], []>} : vector<32x32xf32>, vector<32x512xf32>, vector<32x512xf32> -> vector<32x512xf32>
    %c1_13 = arith.constant 1 : index
    %c0_14 = arith.constant 0 : index
    %c0_15 = arith.constant 0 : index
    %15 = vector.load %arg4[%c1_13, %c0_14, %c0_15] : memref<4x32x1xf32, #tpu.memory_space<vmem>>, vector<1x32x1xf32>
    %16 = vector.shape_cast %15 : vector<1x32x1xf32> to vector<32x1xf32>
    %17 = vector.broadcast %16 : vector<32x1xf32> to vector<32x512xf32>
    %18 = arith.addf %14, %17 : vector<32x512xf32>
    %19 = math.tanh %18 : vector<32x512xf32>
    %c2 = arith.constant 2 : index
    %c0_16 = arith.constant 0 : index
    %c0_17 = arith.constant 0 : index
    %20 = vector.load %arg3[%c2, %c0_16, %c0_17] : memref<4x32x32xf32, #tpu.memory_space<vmem>>, vector<1x32x32xf32>
    %21 = vector.shape_cast %20 : vector<1x32x32xf32> to vector<32x32xf32>
    %cst_18 = arith.constant dense<0.000000e+00> : vector<32x512xf32>
    %22 = tpu.matmul %21, %19, %cst_18 {dimension_numbers = #tpu.dot_dimension_numbers<[1], [0], [0], [1], [0, 0, 1, 1], [], []>} : vector<32x32xf32>, vector<32x512xf32>, vector<32x512xf32> -> vector<32x512xf32>
    %c2_19 = arith.constant 2 : index
    %c0_20 = arith.constant 0 : index
    %c0_21 = arith.constant 0 : index
    %23 = vector.load %arg4[%c2_19, %c0_20, %c0_21] : memref<4x32x1xf32, #tpu.memory_space<vmem>>, vector<1x32x1xf32>
    %24 = vector.shape_cast %23 : vector<1x32x1xf32> to vector<32x1xf32>
    %25 = vector.broadcast %24 : vector<32x1xf32> to vector<32x512xf32>
    %26 = arith.addf %22, %25 : vector<32x512xf32>
    %27 = math.tanh %26 : vector<32x512xf32>
    %c3 = arith.constant 3 : index
    %c0_22 = arith.constant 0 : index
    %c0_23 = arith.constant 0 : index
    %28 = vector.load %arg3[%c3, %c0_22, %c0_23] : memref<4x32x32xf32, #tpu.memory_space<vmem>>, vector<1x32x32xf32>
    %29 = vector.shape_cast %28 : vector<1x32x32xf32> to vector<32x32xf32>
    %cst_24 = arith.constant dense<0.000000e+00> : vector<32x512xf32>
    %30 = tpu.matmul %29, %27, %cst_24 {dimension_numbers = #tpu.dot_dimension_numbers<[1], [0], [0], [1], [0, 0, 1, 1], [], []>} : vector<32x32xf32>, vector<32x512xf32>, vector<32x512xf32> -> vector<32x512xf32>
    %c3_25 = arith.constant 3 : index
    %c0_26 = arith.constant 0 : index
    %c0_27 = arith.constant 0 : index
    %31 = vector.load %arg4[%c3_25, %c0_26, %c0_27] : memref<4x32x1xf32, #tpu.memory_space<vmem>>, vector<1x32x1xf32>
    %32 = vector.shape_cast %31 : vector<1x32x1xf32> to vector<32x1xf32>
    %33 = vector.broadcast %32 : vector<32x1xf32> to vector<32x512xf32>
    %34 = arith.addf %30, %33 : vector<32x512xf32>
    %35 = vector.extract_strided_slice %34 {offsets = [0, 0], sizes = [1, 512], strides = [1, 1]} : vector<32x512xf32> to vector<1x512xf32>
    %c0_28 = arith.constant 0 : index
    %c0_29 = arith.constant 0 : index
    %36 = vector.load %arg5[%c0_28, %c0_29] : memref<1x512xf32, #tpu.memory_space<vmem>>, vector<1x512xf32>
    tpu.vector_store %arg5[%c0_28, %c0_29], %35 {strides = array<i32>} : memref<1x512xf32, #tpu.memory_space<vmem>>, vector<1x512xf32>,
    return
  }
  func.func @transform_0(%arg0: i32) -> (i32, i32) {
    %c0_i32 = arith.constant 0 : i32
    %c0_i32_0 = arith.constant 0 : i32
    return %c0_i32, %arg0 : i32, i32
  }
  func.func @transform_1(%arg0: i32) -> (i32, i32) {
    %c0_i32 = arith.constant 0 : i32
    %c0_i32_0 = arith.constant 0 : i32
    %c0_i32_1 = arith.constant 0 : i32
    return %c0_i32, %c0_i32_0 : i32, i32
  }
  func.func @transform_2(%arg0: i32) -> (i32, i32, i32) {
    %c0_i32 = arith.constant 0 : i32
    %c0_i32_0 = arith.constant 0 : i32
    %c0_i32_1 = arith.constant 0 : i32
    %c0_i32_2 = arith.constant 0 : i32
    return %c0_i32, %c0_i32_0, %c0_i32_1 : i32, i32, i32
  }
  func.func @transform_3(%arg0: i32) -> (i32, i32, i32) {
    %c0_i32 = arith.constant 0 : i32
    %c0_i32_0 = arith.constant 0 : i32
    %c0_i32_1 = arith.constant 0 : i32
    %c0_i32_2 = arith.constant 0 : i32
    return %c0_i32, %c0_i32_0, %c0_i32_1 : i32, i32, i32
  }
  func.func @transform_4(%arg0: i32) -> (i32, i32) {
    %c0_i32 = arith.constant 0 : i32
    %c0_i32_0 = arith.constant 0 : i32
    return %c0_i32, %arg0 : i32, i32
  }
}

</mosaic_0001>

<llo_original>
// kernel: tpu_custom_call.1
$region0: #{tpu_custom_call.1}
  #allocation0 [shape = 'u32[]', space=smem, size = 0x4, offset = 0x4, fixed_abs, tag = 'smem constant byte address 0x4 - core index']
  #allocation1 [shape = 'u32[144,128]{1,0:T(1,128)}', space=vmem, size = 0x12000, scoped, tag = 'internal scratch']
  %s0 = inlined_call_operand.hbm [shape: f32[8,1024], index: 0, kind: input, shape index: {}]
  %s1 = inlined_call_operand.vmem [shape: f32[32,8], index: 1, kind: input, shape index: {}]
  %s2 = inlined_call_operand.vmem [shape: f32[4,32,32], index: 2, kind: input, shape index: {}]
  %s3 = inlined_call_operand.vmem [shape: f32[4,32,1], index: 3, kind: input, shape index: {}]
  %s4 = inlined_call_operand.hbm [shape: f32[1,1024], index: 4, kind: output, shape index: {}]
  %s5 = sld [smem:[#allocation0]]
  $region53: #{tpu_custom_call.1} parent=0
    _
  %s7 = ssub.s32 1, %s5
  %s8 = scalar_select 0, %s7, %s5
  $region1: #{tpu_custom_call.1} parent=0
    #allocation2 [shape = 'u8[32768]{0}', space=vmem, size = 0x8000, scoped, tag = 'input window, operand 0']
    #allocation3 [shape = 's32[2]{0}', space=sflag, size = 0x8, scoped, tag = 'scoped memory for tpu_custom_call.1']
    #allocation4 [shape = 's32[2]{0}', space=sflag, size = 0x8, scoped, tag = 'scoped memory for tpu_custom_call.1']
    #allocation5 [shape = 'u8[4096]{0}', space=vmem, size = 0x1000, scoped, tag = 'output window, operand 0']
    %9 = vsyncpa [#allocation3], 0
    %s10 = scalar_lea.sflag [#allocation3], 1
    %11 = vsyncpa %s10, 0
    %12 = vsyncpa [#allocation4], 0
    %s13 = scalar_lea.sflag [#allocation4], 1
    %14 = vsyncpa %s13, 0
    loop: start=0, step=1, limit=4
    $region2: #{tpu_custom_call.1} parent=1 // loop_pre_header
      _
    $region3: #{tpu_custom_call.1} parent=1 // loop_header
      %s16 = sphi 0, %s20
      %p17 = scmp.ge.s32.totalorder %s16, 4
      %s26 = sphi 0, %s28
      %s29 = sphi 0, %s26
      %s30 = sphi 0, %s29
      %s46 = sphi 0, %s30
      %s50 = sphi 0, %s50
      %s52 = sphi 0, %s50
      %s53 = sphi 0, %s52
      %s67 = sphi 0, %s53
      %s71 = sphi 0, %s71
      %s73 = sphi 0, %s71
      %s74 = sphi 0, %s73
      %s88 = sphi 0, %s74
      %s92 = sphi 0, %s92
      %s94 = sphi 0, %s92
      %s95 = sphi 0, %s94
      %s109 = sphi 0, %s95
      %s115 = sphi 0, %s117
      %s118 = sphi 0, %s115
      %s119 = sphi 0, %s118
      %s135 = sphi 0, %s119
    $region4: #{tpu_custom_call.1} parent=1 // loop_header_branch
      %19 = sbr.rel (%p17) target = $region8
    $region5: #{tpu_custom_call.1} parent=1 // loop_body
      %s21 = ssub.s32 %s16, 1
      %s22 = ssub.s32 %s16, 2
      %s23 = sadd.s32 %s16, 1
      %s24 = ssub.s32 %s16, %s23
      %p25 = scmp.eq.s32.totalorder %s24, 0
      %s27 = sadd.s32 %s26, 1
      %s28 = scalar_select %p25, %s26, %s27
      %p31 = pneg %p25
      %p32 = scmp.eq.s32.totalorder %s16, 1
      %p33 = por %p31, %p32
      %p34 = scmp.ne.s32.totalorder %s26, %s29
      %p35 = scmp.eq.s32.totalorder %s16, 0
      %p36 = por %p34, %p35
      %p37 = scmp.ne.s32.totalorder %s26, %s29
      %p38 = scmp.eq.s32.totalorder %s21, 1
      %p39 = por %p37, %p38
      %p40 = scmp.ne.s32.totalorder %s29, %s30
      %p41 = scmp.eq.s32.totalorder %s21, 0
      %p42 = por %p40, %p41
      %p43 = scmp.ne.s32.totalorder %s29, %s30
      %p44 = scmp.eq.s32.totalorder %s22, 1
      %p45 = por %p43, %p44
      %p47 = scmp.ne.s32.totalorder %s30, %s46
      %p48 = scmp.eq.s32.totalorder %s22, 0
      %p49 = por %p47, %p48
      %s51 = sadd.s32 %s50, 1
      %p54 = scmp.eq.s32.totalorder %s16, 1
      %p55 = scmp.ne.s32.totalorder %s50, %s52
      %p56 = scmp.eq.s32.totalorder %s16, 0
      %p57 = por %p55, %p56
      %p58 = scmp.ne.s32.totalorder %s50, %s52
      %p59 = scmp.eq.s32.totalorder %s21, 1
      %p60 = por %p58, %p59
      %p61 = scmp.ne.s32.totalorder %s52, %s53
      %p62 = scmp.eq.s32.totalorder %s21, 0
      %p63 = por %p61, %p62
      %p64 = scmp.ne.s32.totalorder %s52, %s53
      %p65 = scmp.eq.s32.totalorder %s22, 1
      %p66 = por %p64, %p65
      %p68 = scmp.ne.s32.totalorder %s53, %s67
      %p69 = scmp.eq.s32.totalorder %s22, 0
      %p70 = por %p68, %p69
      %s72 = sadd.s32 %s71, 1
      %p75 = scmp.eq.s32.totalorder %s16, 1
      %p76 = scmp.ne.s32.totalorder %s71, %s73
      %p77 = scmp.eq.s32.totalorder %s16, 0
      %p78 = por %p76, %p77
      %p79 = scmp.ne.s32.totalorder %s71, %s73
      %p80 = scmp.eq.s32.totalorder %s21, 1
      %p81 = por %p79, %p80
      %p82 = scmp.ne.s32.totalorder %s73, %s74
      %p83 = scmp.eq.s32.totalorder %s21, 0
      %p84 = por %p82, %p83
      %p85 = scmp.ne.s32.totalorder %s73, %s74
      %p86 = scmp.eq.s32.totalorder %s22, 1
      %p87 = por %p85, %p86
      %p89 = scmp.ne.s32.totalorder %s74, %s88
      %p90 = scmp.eq.s32.totalorder %s22, 0
      %p91 = por %p89, %p90
      %s93 = sadd.s32 %s92, 1
      %p96 = scmp.eq.s32.totalorder %s16, 1
      %p97 = scmp.ne.s32.totalorder %s92, %s94
      %p98 = scmp.eq.s32.totalorder %s16, 0
      %p99 = por %p97, %p98
      %p100 = scmp.ne.s32.totalorder %s92, %s94
      %p101 = scmp.eq.s32.totalorder %s21, 1
      %p102 = por %p100, %p101
      %p103 = scmp.ne.s32.totalorder %s94, %s95
      %p104 = scmp.eq.s32.totalorder %s21, 0
      %p105 = por %p103, %p104
      %p106 = scmp.ne.s32.totalorder %s94, %s95
      %p107 = scmp.eq.s32.totalorder %s22, 1
      %p108 = por %p106, %p107
      %p110 = scmp.ne.s32.totalorder %s95, %s109
      %p111 = scmp.eq.s32.totalorder %s22, 0
      %p112 = por %p110, %p111
      %s113 = ssub.s32 %s16, %s23
      %p114 = scmp.eq.s32.totalorder %s113, 0
      %s116 = sadd.s32 %s115, 1
      %s117 = scalar_select %p114, %s115, %s116
      %p120 = pneg %p114
      %p121 = scmp.eq.s32.totalorder %s16, 1
      %p122 = por %p120, %p121
      %p123 = scmp.ne.s32.totalorder %s115, %s118
      %p124 = scmp.eq.s32.totalorder %s16, 0
      %p125 = por %p123, %p124
      %p126 = scmp.ne.s32.totalorder %s115, %s118
      %p127 = scmp.eq.s32.totalorder %s21, 1
      %p128 = por %p126, %p127
      %p129 = scmp.ne.s32.totalorder %s118, %s119
      %p130 = scmp.eq.s32.totalorder %s21, 0
      %p131 = por %p129, %p130
      %p132 = scmp.ne.s32.totalorder %s118, %s119
      %p133 = scmp.eq.s32.totalorder %s22, 1
      %p134 = por %p132, %p133
      %p136 = scmp.ne.s32.totalorder %s119, %s135
      %p137 = scmp.eq.s32.totalorder %s22, 0
      %p138 = por %p136, %p137
      %p139 = scmp.le.s32.totalorder 1, %s16
      %p140 = scmp.lt.s32.totalorder %s16, 3
      %p141 = pnand %p139, %p140
      %p142 = pneg %p141
      // Predicated region
      $region9: #{tpu_custom_call.1} parent=5 // pred_check
        _
      $region10: #{tpu_custom_call.1} parent=5 // pred_check_branch
        %144 = sbr.rel (%p141) target = $region12
      $region11: #{tpu_custom_call.1} parent=5 // pred_region
        %s145 = ssub.s32 %s16, 1
        // Predicated region
        $region13: #{tpu_custom_call.1} parent=11 // pred_check
          %p146 = pneg %p63
        $region14: #{tpu_custom_call.1} parent=11 // pred_check_branch
          %148 = sbr.rel (%p146) target = $region16
        $region15: #{tpu_custom_call.1} parent=11 // pred_region
          _
        $region16: #{tpu_custom_call.1} parent=11 // pred_fallthru
          _
        // Predicated region
        $region17: #{tpu_custom_call.1} parent=11 // pred_check
          %p149 = pneg %p84
        $region18: #{tpu_custom_call.1} parent=11 // pred_check_branch
          %151 = sbr.rel (%p149) target = $region20
        $region19: #{tpu_custom_call.1} parent=11 // pred_region
          _
        $region20: #{tpu_custom_call.1} parent=11 // pred_fallthru
          _
        // Predicated region
        $region21: #{tpu_custom_call.1} parent=11 // pred_check
          %p152 = pneg %p105
        $region22: #{tpu_custom_call.1} parent=11 // pred_check_branch
          %154 = sbr.rel (%p152) target = $region24
        $region23: #{tpu_custom_call.1} parent=11 // pred_region
          _
        $region24: #{tpu_custom_call.1} parent=11 // pred_fallthru
          _
      $region12: #{tpu_custom_call.1} parent=5 // pred_fallthru
        _
      %p155 = scmp.lt.s32.totalorder %s16, 2
      // Predicated region
      $region25: #{tpu_custom_call.1} parent=5 // pred_check
        %p156 = pneg %p155
      $region26: #{tpu_custom_call.1} parent=5 // pred_check_branch
        %158 = sbr.rel (%p156) target = $region28
      $region27: #{tpu_custom_call.1} parent=5 // pred_region
        // Predicated region
        $region29: #{tpu_custom_call.1} parent=27 // pred_check
          %p159 = pneg %p36
        $region30: #{tpu_custom_call.1} parent=27 // pred_check_branch
          %161 = sbr.rel (%p159) target = $region32
        $region31: #{tpu_custom_call.1} parent=27 // pred_region
          %s162 = sand.u32 %s26, 1
          %s163 = scalar_lea.sflag [#allocation3], %s162
          %s164 = sand.u32 %s26, 1
          %s165 = smul.addr %s164, 32
          %s166 = scalar_lea.vmem [#allocation2], %s165
          %s167 = smul.u32 4, %s16
          %s169 = ssub.s32 512, 512
          %170 = vsyncadd %s163, %s169
          %s171 = smul.addr %s167, 128
          %s172 = scalar_lea.hbm %s0, %s171
          %s174 = sshll.u32 %s166, 4
          %s175 = int_to_ptr.vmem [resolvable:$true] %s174
          %177 = dma.hbm_to_vmem [thread:$0]  %s172, 512, %s175, %s163
        $region32: #{tpu_custom_call.1} parent=27 // pred_fallthru
          _
      $region28: #{tpu_custom_call.1} parent=5 // pred_fallthru
        _
      %p178 = scmp.le.s32.totalorder 1, %s16
      %p179 = scmp.lt.s32.totalorder %s16, 3
      %p180 = pnand %p178, %p179
      %p181 = pneg %p180
      // Predicated region
      $region33: #{tpu_custom_call.1} parent=5 // pred_check
        _
      $region34: #{tpu_custom_call.1} parent=5 // pred_check_branch
        %183 = sbr.rel (%p180) target = $region36
      $region35: #{tpu_custom_call.1} parent=5 // pred_region
        %s184 = ssub.s32 %s16, 1
        %s185 = sand.u32 %s29, 1
        %s186 = scalar_lea.sflag [#allocation3], %s185
        %s187 = sand.u32 %s29, 1
        %s188 = smul.addr %s187, 32
        %s189 = scalar_lea.vmem [#allocation2], %s188
        // Predicated region
        $region37: #{tpu_custom_call.1} parent=35 // pred_check
          %p190 = pneg %p42
        $region38: #{tpu_custom_call.1} parent=35 // pred_check_branch
          %192 = sbr.rel (%p190) target = $region40
        $region39: #{tpu_custom_call.1} parent=35 // pred_region
          %193 = dma.done %s186, 512
        $region40: #{tpu_custom_call.1} parent=35 // pred_fallthru
          _
        %s194 = sand.u32 %s29, 1
        %s195 = scalar_lea.sflag [#allocation3], %s194
        %s196 = sand.u32 %s29, 1
        %s197 = smul.addr %s196, 32
        %s198 = scalar_lea.vmem [#allocation2], %s197
        %p199 = pneg %p42
        %p200 = pneg %p39
        %p201 = pneg %p63
        %p202 = pneg %p60
        %p203 = pneg %p84
        %p204 = pneg %p81
        %p205 = pneg %p105
        %p206 = pneg %p102
        %p207 = pneg %p131
        %p208 = pneg %p128
        %s209 = sand.u32 %s118, 1
        %s210 = scalar_lea.sflag [#allocation4], %s209
        %s211 = sand.u32 %s118, 1
        %s212 = smul.addr %s211, 4
        %s213 = scalar_lea.vmem [#allocation5], %s212
        %s214 = smul.u32 4, %s21
        %s215 = smul.u32 4, %s21
        %v216 = vld [vmem:[%s189] sm:$0xff]
        %v217 = vld [vmem:[%s189 + $0x8] sm:$0xff]
        %v218 = vld [vmem:[%s189 + $0x10] sm:$0xff]
        %v219 = vld [vmem:[%s189 + $0x18] sm:$0xff]
        %v220 = vld [vmem:[%s1] sm:$0xff]
        %v221 = vld [vmem:[%s1 + $0x8] sm:$0xff]
        %v222 = vld [vmem:[%s1 + $0x10] sm:$0xff]
        %v223 = vld [vmem:[%s1 + $0x18] sm:$0xff]
        %vm224 = vcmask 64512
        %v226 = vsel %vm224, %v220, 0
        %v229 = vsel %vm224, %v221, 0
        %v232 = vsel %vm224, %v222, 0
        %v235 = vsel %vm224, %v223, 0
        %237 = vmatprep.subr.mxu0 0.0
        %238 = vmatpush1.msra.mxu0 0.0
        %239 = vmatprep.subr.mxu0 0.0
        %240 = vmatpush1.msra.mxu0 0.0
        %241 = vmatprep.subr.mxu0 0.0
        %242 = vmatpush1.msra.mxu0 0.0
        %243 = vmatprep.subr.mxu0 0.0
        %244 = vmatpush1.msra.mxu0 0.0
        %245 = vmatprep.subr.mxu0 0.0
        %246 = vmatpush1.msra.mxu0 0.0
        %247 = vmatprep.subr.mxu0 0.0
        %248 = vmatpush1.msra.mxu0 0.0
        %249 = vmatprep.subr.mxu0 0.0
        %250 = vmatpush1.msra.mxu0 0.0
        %251 = vmatprep.subr.mxu0 0.0
        %252 = vmatpush1.msra.mxu0 0.0
        %253 = vmatprep.subr.mxu0 0.0
        %254 = vmatpush1.msra.mxu0 0.0
        %255 = vmatprep.subr.mxu0 0.0
        %256 = vmatpush1.msra.mxu0 0.0
        %257 = vmatprep.subr.mxu0 0.0
        %258 = vmatpush1.msra.mxu0 0.0
        %259 = vmatprep.subr.mxu0 0.0
        %260 = vmatpush1.msra.mxu0 0.0
        %261 = vmatprep.subr.mxu0 0.0
        %262 = vmatpush1.msra.mxu0 0.0
        %263 = vmatprep.subr.mxu0 0.0
        %264 = vmatpush1.msra.mxu0 0.0
        %265 = vmatprep.subr.mxu0 0.0
        %266 = vmatpush1.msra.mxu0 0.0
        %267 = vmatprep.subr.mxu0 %v217
        %268 = vmatpush1.msra.mxu0 %v216
        %269 = vmatprep.subr.mxu0 0.0
        %270 = vmatpush2.msra.mxu0 0.0
        %271 = vmatprep.subr.mxu0 0.0
        %272 = vmatpush2.msra.mxu0 0.0
        %273 = vmatprep.subr.mxu0 0.0
        %274 = vmatpush2.msra.mxu0 0.0
        %275 = vmatprep.subr.mxu0 0.0
        %276 = vmatpush2.msra.mxu0 0.0
        %277 = vmatprep.subr.mxu0 0.0
        %278 = vmatpush2.msra.mxu0 0.0
        %279 = vmatprep.subr.mxu0 0.0
        %280 = vmatpush2.msra.mxu0 0.0
        %281 = vmatprep.subr.mxu0 0.0
        %282 = vmatpush2.msra.mxu0 0.0
        %283 = vmatprep.subr.mxu0 0.0
        %284 = vmatpush2.msra.mxu0 0.0
        %285 = vmatprep.subr.mxu0 0.0
        %286 = vmatpush2.msra.mxu0 0.0
        %287 = vmatprep.subr.mxu0 0.0
        %288 = vmatpush2.msra.mxu0 0.0
        %289 = vmatprep.subr.mxu0 0.0
        %290 = vmatpush2.msra.mxu0 0.0
        %291 = vmatprep.subr.mxu0 0.0
        %292 = vmatpush2.msra.mxu0 0.0
        %293 = vmatprep.subr.mxu0 0.0
        %294 = vmatpush2.msra.mxu0 0.0
        %295 = vmatprep.subr.mxu0 0.0
        %296 = vmatpush2.msra.mxu0 0.0
        %297 = vmatprep.subr.mxu0 0.0
        %298 = vmatpush2.msra.mxu0 0.0
        %299 = vmatprep.subr.mxu0 0.0
        %300 = vmatpush2.msra.mxu0 0.0
        %301 = vmatprep.mubr.f32.mxu0 0.0
        %302 = vmatmul.mubr.f32.gmra.mxu0 %v226
        %v303 = vpop.f32.mrf.mxu0
        %v304 = vadd.f32 0.0, %v303
        %v305 = vpop.f32.mrf.mxu0
        %v306 = vadd.f32 0.0, %v305
        %307 = vmatprep.mubr.f32.mxu0 0.0
        %308 = vmatmul.mubr.f32.gmra.mxu0 %v229
        %v309 = vpop.f32.mrf.mxu0
        %v310 = vadd.f32 0.0, %v309
        %v311 = vpop.f32.mrf.mxu0
        %v312 = vadd.f32 0.0, %v311
        %313 = vmatprep.mubr.f32.mxu0 0.0
        %314 = vmatmul.mubr.f32.gmra.mxu0 %v232
        %v315 = vpop.f32.mrf.mxu0
        %v316 = vadd.f32 0.0, %v315
        %v317 = vpop.f32.mrf.mxu0
        %v318 = vadd.f32 0.0, %v317
        %319 = vmatprep.mubr.f32.mxu0 0.0
        %320 = vmatmul.mubr.f32.gmra.mxu0 %v235
        %v321 = vpop.f32.mrf.mxu0
        %v322 = vadd.f32 0.0, %v321
        %v323 = vpop.f32.mrf.mxu0
        %v324 = vadd.f32 0.0, %v323
        %325 = vdwg.mxu0
        %326 = vmatprep.subr.mxu0 0.0
        %327 = vmatpush1.msra.mxu0 0.0
        %328 = vmatprep.subr.mxu0 0.0
        %329 = vmatpush1.msra.mxu0 0.0
        %330 = vmatprep.subr.mxu0 0.0
        %331 = vmatpush1.msra.mxu0 0.0
        %332 = vmatprep.subr.mxu0 0.0
        %333 = vmatpush1.msra.mxu0 0.0
        %334 = vmatprep.subr.mxu0 0.0
        %335 = vmatpush1.msra.mxu0 0.0
        %336 = vmatprep.subr.mxu0 0.0
        %337 = vmatpush1.msra.mxu0 0.0
        %338 = vmatprep.subr.mxu0 0.0
        %339 = vmatpush1.msra.mxu0 0.0
        %340 = vmatprep.subr.mxu0 0.0
        %341 = vmatpush1.msra.mxu0 0.0
        %342 = vmatprep.subr.mxu0 0.0
        %343 = vmatpush1.msra.mxu0 0.0
        %344 = vmatprep.subr.mxu0 0.0
        %345 = vmatpush1.msra.mxu0 0.0
        %346 = vmatprep.subr.mxu0 0.0
        %347 = vmatpush1.msra.mxu0 0.0
        %348 = vmatprep.subr.mxu0 0.0
        %349 = vmatpush1.msra.mxu0 0.0
        %350 = vmatprep.subr.mxu0 0.0
        %351 = vmatpush1.msra.mxu0 0.0
        %352 = vmatprep.subr.mxu0 0.0
        %353 = vmatpush1.msra.mxu0 0.0
        %354 = vmatprep.subr.mxu0 0.0
        %355 = vmatpush1.msra.mxu0 0.0
        %356 = vmatprep.subr.mxu0 %v219
        %357 = vmatpush1.msra.mxu0 %v218
        %358 = vmatprep.subr.mxu0 0.0
        %359 = vmatpush2.msra.mxu0 0.0
        %360 = vmatprep.subr.mxu0 0.0
        %361 = vmatpush2.msra.mxu0 0.0
        %362 = vmatprep.subr.mxu0 0.0
        %363 = vmatpush2.msra.mxu0 0.0
        %364 = vmatprep.subr.mxu0 0.0
        %365 = vmatpush2.msra.mxu0 0.0
        %366 = vmatprep.subr.mxu0 0.0
        %367 = vmatpush2.msra.mxu0 0.0
        %368 = vmatprep.subr.mxu0 0.0
        %369 = vmatpush2.msra.mxu0 0.0
        %370 = vmatprep.subr.mxu0 0.0
        %371 = vmatpush2.msra.mxu0 0.0
        %372 = vmatprep.subr.mxu0 0.0
        %373 = vmatpush2.msra.mxu0 0.0
        %374 = vmatprep.subr.mxu0 0.0
        %375 = vmatpush2.msra.mxu0 0.0
        %376 = vmatprep.subr.mxu0 0.0
        %377 = vmatpush2.msra.mxu0 0.0
        %378 = vmatprep.subr.mxu0 0.0
        %379 = vmatpush2.msra.mxu0 0.0
        %380 = vmatprep.subr.mxu0 0.0
        %381 = vmatpush2.msra.mxu0 0.0
        %382 = vmatprep.subr.mxu0 0.0
        %383 = vmatpush2.msra.mxu0 0.0
        %384 = vmatprep.subr.mxu0 0.0
        %385 = vmatpush2.msra.mxu0 0.0
        %386 = vmatprep.subr.mxu0 0.0
        %387 = vmatpush2.msra.mxu0 0.0
        %388 = vmatprep.subr.mxu0 0.0
        %389 = vmatpush2.msra.mxu0 0.0
        %390 = vmatprep.mubr.f32.mxu0 0.0
        %391 = vmatmul.mubr.f32.gmra.mxu0 %v226
        %v392 = vpop.f32.mrf.mxu0
        %v393 = vadd.f32 0.0, %v392
        %v394 = vpop.f32.mrf.mxu0
        %v395 = vadd.f32 0.0, %v394
        %396 = vmatprep.mubr.f32.mxu0 0.0
        %397 = vmatmul.mubr.f32.gmra.mxu0 %v229
        %v398 = vpop.f32.mrf.mxu0
        %v399 = vadd.f32 0.0, %v398
        %v400 = vpop.f32.mrf.mxu0
        %v401 = vadd.f32 0.0, %v400
        %402 = vmatprep.mubr.f32.mxu0 0.0
        %403 = vmatmul.mubr.f32.gmra.mxu0 %v232
        %v404 = vpop.f32.mrf.mxu0
        %v405 = vadd.f32 0.0, %v404
        %v406 = vpop.f32.mrf.mxu0
        %v407 = vadd.f32 0.0, %v406
        %408 = vmatprep.mubr.f32.mxu0 0.0
        %409 = vmatmul.mubr.f32.gmra.mxu0 %v235
        %v410 = vpop.f32.mrf.mxu0
        %v411 = vadd.f32 0.0, %v410
        %v412 = vpop.f32.mrf.mxu0
        %v413 = vadd.f32 0.0, %v412
        %414 = vdwg.mxu0
        %v415 = vtanh.pop %v304
        %v416 = vtanh.pop %v306
        %v417 = vtanh.pop %v393
        %v418 = vtanh.pop %v395
        %v419 = vtanh.pop %v310
        %v420 = vtanh.pop %v312
        %v421 = vtanh.pop %v399
        %v422 = vtanh.pop %v401
        %v423 = vtanh.pop %v316
        %v424 = vtanh.pop %v318
        %v425 = vtanh.pop %v405
        %v426 = vtanh.pop %v407
        %v427 = vtanh.pop %v322
        %v428 = vtanh.pop %v324
        %v429 = vtanh.pop %v411
        %v430 = vtanh.pop %v413
        %v431 = vld [vmem:[%s2] sm:$0xff]
        %v432 = vld [vmem:[%s2 + $0x8] sm:$0xff]
        %v433 = vld [vmem:[%s2 + $0x10] sm:$0xff]
        %v434 = vld [vmem:[%s2 + $0x18] sm:$0xff]
        %v435 = vld [vmem:[%s3] sm:$0xff]
        %v436 = vld [vmem:[%s3 + $0x8] sm:$0xff]
        %v437 = vld [vmem:[%s3 + $0x10] sm:$0xff]
        %v438 = vld [vmem:[%s3 + $0x18] sm:$0xff]
        %440 = vset.pattern.permute.xlu0 0
        %441 = vperm.xlu0 %440, %v435
        %v442 = vpop.permute.xlu0 %441
        %445 = vset.pattern.permute.xlu0 0
        %446 = vperm.xlu0 %445, %v436
        %v447 = vpop.permute.xlu0 %446
        %450 = vset.pattern.permute.xlu0 0
        %451 = vperm.xlu0 %450, %v437
        %v452 = vpop.permute.xlu0 %451
        %455 = vset.pattern.permute.xlu0 0
        %456 = vperm.xlu0 %455, %v438
        %v457 = vpop.permute.xlu0 %456
        %vm459 = vcmask 261120
        %v461 = vsel %vm459, %v431, 0
        %v464 = vsel %vm459, %v432, 0
        %v467 = vsel %vm459, %v433, 0
        %v470 = vsel %vm459, %v434, 0
        %472 = vmatprep.subr.mxu0 0.0
        %473 = vmatpush1.msra.mxu0 0.0
        %474 = vmatprep.subr.mxu0 0.0
        %475 = vmatpush1.msra.mxu0 0.0
        %476 = vmatprep.subr.mxu0 0.0
        %477 = vmatpush1.msra.mxu0 0.0
        %478 = vmatprep.subr.mxu0 0.0
        %479 = vmatpush1.msra.mxu0 0.0
        %480 = vmatprep.subr.mxu0 0.0
        %481 = vmatpush1.msra.mxu0 0.0
        %482 = vmatprep.subr.mxu0 0.0
        %483 = vmatpush1.msra.mxu0 0.0
        %484 = vmatprep.subr.mxu0 0.0
        %485 = vmatpush1.msra.mxu0 0.0
        %486 = vmatprep.subr.mxu0 0.0
        %487 = vmatpush1.msra.mxu0 0.0
        %488 = vmatprep.subr.mxu0 0.0
        %489 = vmatpush1.msra.mxu0 0.0
        %490 = vmatprep.subr.mxu0 0.0
        %491 = vmatpush1.msra.mxu0 0.0
        %492 = vmatprep.subr.mxu0 0.0
        %493 = vmatpush1.msra.mxu0 0.0
        %494 = vmatprep.subr.mxu0 0.0
        %495 = vmatpush1.msra.mxu0 0.0
        %496 = vmatprep.subr.mxu0 %v428
        %497 = vmatpush1.msra.mxu0 %v427
        %498 = vmatprep.subr.mxu0 %v424
        %499 = vmatpush1.msra.mxu0 %v423
        %500 = vmatprep.subr.mxu0 %v420
        %501 = vmatpush1.msra.mxu0 %v419
        %502 = vmatprep.subr.mxu0 %v416
        %503 = vmatpush1.msra.mxu0 %v415
        %504 = vmatprep.subr.mxu0 0.0
        %505 = vmatpush2.msra.mxu0 0.0
        %506 = vmatprep.subr.mxu0 0.0
        %507 = vmatpush2.msra.mxu0 0.0
        %508 = vmatprep.subr.mxu0 0.0
        %509 = vmatpush2.msra.mxu0 0.0
        %510 = vmatprep.subr.mxu0 0.0
        %511 = vmatpush2.msra.mxu0 0.0
        %512 = vmatprep.subr.mxu0 0.0
        %513 = vmatpush2.msra.mxu0 0.0
        %514 = vmatprep.subr.mxu0 0.0
        %515 = vmatpush2.msra.mxu0 0.0
        %516 = vmatprep.subr.mxu0 0.0
        %517 = vmatpush2.msra.mxu0 0.0
        %518 = vmatprep.subr.mxu0 0.0
        %519 = vmatpush2.msra.mxu0 0.0
        %520 = vmatprep.subr.mxu0 0.0
        %521 = vmatpush2.msra.mxu0 0.0
        %522 = vmatprep.subr.mxu0 0.0
        %523 = vmatpush2.msra.mxu0 0.0
        %524 = vmatprep.subr.mxu0 0.0
        %525 = vmatpush2.msra.mxu0 0.0
        %526 = vmatprep.subr.mxu0 0.0
        %527 = vmatpush2.msra.mxu0 0.0
        %528 = vmatprep.subr.mxu0 0.0
        %529 = vmatpush2.msra.mxu0 0.0
        %530 = vmatprep.subr.mxu0 0.0
        %531 = vmatpush2.msra.mxu0 0.0
        %532 = vmatprep.subr.mxu0 0.0
        %533 = vmatpush2.msra.mxu0 0.0
        %534 = vmatprep.subr.mxu0 0.0
        %535 = vmatpush2.msra.mxu0 0.0
        %536 = vmatprep.mubr.f32.mxu0 0.0
        %537 = vmatmul.mubr.f32.gmra.mxu0 %v461
        %v538 = vpop.f32.mrf.mxu0
        %v539 = vadd.f32 %v442, %v538
        %v540 = vpop.f32.mrf.mxu0
        %v541 = vadd.f32 %v442, %v540
        %542 = vmatprep.mubr.f32.mxu0 0.0
        %543 = vmatmul.mubr.f32.gmra.mxu0 %v464
        %v544 = vpop.f32.mrf.mxu0
        %v545 = vadd.f32 %v447, %v544
        %v546 = vpop.f32.mrf.mxu0
        %v547 = vadd.f32 %v447, %v546
        %548 = vmatprep.mubr.f32.mxu0 0.0
        %549 = vmatmul.mubr.f32.gmra.mxu0 %v467
        %v550 = vpop.f32.mrf.mxu0
        %v551 = vadd.f32 %v452, %v550
        %v552 = vpop.f32.mrf.mxu0
        %v553 = vadd.f32 %v452, %v552
        %554 = vmatprep.mubr.f32.mxu0 0.0
        %555 = vmatmul.mubr.f32.gmra.mxu0 %v470
        %v556 = vpop.f32.mrf.mxu0
        %v557 = vadd.f32 %v457, %v556
        %v558 = vpop.f32.mrf.mxu0
        %v559 = vadd.f32 %v457, %v558
        %560 = vdwg.mxu0
        %561 = vmatprep.subr.mxu0 0.0
        %562 = vmatpush1.msra.mxu0 0.0
        %563 = vmatprep.subr.mxu0 0.0
        %564 = vmatpush1.msra.mxu0 0.0
        %565 = vmatprep.subr.mxu0 0.0
        %566 = vmatpush1.msra.mxu0 0.0
        %567 = vmatprep.subr.mxu0 0.0
        %568 = vmatpush1.msra.mxu0 0.0
        %569 = vmatprep.subr.mxu0 0.0
        %570 = vmatpush1.msra.mxu0 0.0
        %571 = vmatprep.subr.mxu0 0.0
        %572 = vmatpush1.msra.mxu0 0.0
        %573 = vmatprep.subr.mxu0 0.0
        %574 = vmatpush1.msra.mxu0 0.0
        %575 = vmatprep.subr.mxu0 0.0
        %576 = vmatpush1.msra.mxu0 0.0
        %577 = vmatprep.subr.mxu0 0.0
        %578 = vmatpush1.msra.mxu0 0.0
        %579 = vmatprep.subr.mxu0 0.0
        %580 = vmatpush1.msra.mxu0 0.0
        %581 = vmatprep.subr.mxu0 0.0
        %582 = vmatpush1.msra.mxu0 0.0
        %583 = vmatprep.subr.mxu0 0.0
        %584 = vmatpush1.msra.mxu0 0.0
        %585 = vmatprep.subr.mxu0 %v430
        %586 = vmatpush1.msra.mxu0 %v429
        %587 = vmatprep.subr.mxu0 %v426
        %588 = vmatpush1.msra.mxu0 %v425
        %589 = vmatprep.subr.mxu0 %v422
        %590 = vmatpush1.msra.mxu0 %v421
        %591 = vmatprep.subr.mxu0 %v418
        %592 = vmatpush1.msra.mxu0 %v417
        %593 = vmatprep.subr.mxu0 0.0
        %594 = vmatpush2.msra.mxu0 0.0
        %595 = vmatprep.subr.mxu0 0.0
        %596 = vmatpush2.msra.mxu0 0.0
        %597 = vmatprep.subr.mxu0 0.0
        %598 = vmatpush2.msra.mxu0 0.0
        %599 = vmatprep.subr.mxu0 0.0
        %600 = vmatpush2.msra.mxu0 0.0
        %601 = vmatprep.subr.mxu0 0.0
        %602 = vmatpush2.msra.mxu0 0.0
        %603 = vmatprep.subr.mxu0 0.0
        %604 = vmatpush2.msra.mxu0 0.0
        %605 = vmatprep.subr.mxu0 0.0
        %606 = vmatpush2.msra.mxu0 0.0
        %607 = vmatprep.subr.mxu0 0.0
        %608 = vmatpush2.msra.mxu0 0.0
        %609 = vmatprep.subr.mxu0 0.0
        %610 = vmatpush2.msra.mxu0 0.0
        %611 = vmatprep.subr.mxu0 0.0
        %612 = vmatpush2.msra.mxu0 0.0
        %613 = vmatprep.subr.mxu0 0.0
        %614 = vmatpush2.msra.mxu0 0.0
        %615 = vmatprep.subr.mxu0 0.0
        %616 = vmatpush2.msra.mxu0 0.0
        %617 = vmatprep.subr.mxu0 0.0
        %618 = vmatpush2.msra.mxu0 0.0
        %619 = vmatprep.subr.mxu0 0.0
        %620 = vmatpush2.msra.mxu0 0.0
        %621 = vmatprep.subr.mxu0 0.0
        %622 = vmatpush2.msra.mxu0 0.0
        %623 = vmatprep.subr.mxu0 0.0
        %624 = vmatpush2.msra.mxu0 0.0
        %625 = vmatprep.mubr.f32.mxu0 0.0
        %626 = vmatmul.mubr.f32.gmra.mxu0 %v461
        %v627 = vpop.f32.mrf.mxu0
        %v628 = vadd.f32 %v442, %v627
        %v629 = vpop.f32.mrf.mxu0
        %v630 = vadd.f32 %v442, %v629
        %631 = vmatprep.mubr.f32.mxu0 0.0
        %632 = vmatmul.mubr.f32.gmra.mxu0 %v464
        %v633 = vpop.f32.mrf.mxu0
        %v634 = vadd.f32 %v447, %v633
        %v635 = vpop.f32.mrf.mxu0
        %v636 = vadd.f32 %v447, %v635
        %637 = vmatprep.mubr.f32.mxu0 0.0
        %638 = vmatmul.mubr.f32.gmra.mxu0 %v467
        %v639 = vpop.f32.mrf.mxu0
        %v640 = vadd.f32 %v452, %v639
        %v641 = vpop.f32.mrf.mxu0
        %v642 = vadd.f32 %v452, %v641
        %643 = vmatprep.mubr.f32.mxu0 0.0
        %644 = vmatmul.mubr.f32.gmra.mxu0 %v470
        %v645 = vpop.f32.mrf.mxu0
        %v646 = vadd.f32 %v457, %v645
        %v647 = vpop.f32.mrf.mxu0
        %v648 = vadd.f32 %v457, %v647
        %649 = vdwg.mxu0
        %v650 = vtanh.pop %v539
        %v651 = vtanh.pop %v541
        %v652 = vtanh.pop %v628
        %v653 = vtanh.pop %v630
        %v654 = vtanh.pop %v545
        %v655 = vtanh.pop %v547
        %v656 = vtanh.pop %v634
        %v657 = vtanh.pop %v636
        %v658 = vtanh.pop %v551
        %v659 = vtanh.pop %v553
        %v660 = vtanh.pop %v640
        %v661 = vtanh.pop %v642
        %v662 = vtanh.pop %v557
        %v663 = vtanh.pop %v559
        %v664 = vtanh.pop %v646
        %v665 = vtanh.pop %v648
        %s666 = scalar_lea.vmem %s2, 32
        %v667 = vld [vmem:[%s666] sm:$0xff]
        %v668 = vld [vmem:[%s666 + $0x8] sm:$0xff]
        %v669 = vld [vmem:[%s666 + $0x10] sm:$0xff]
        %v670 = vld [vmem:[%s666 + $0x18] sm:$0xff]
        %s671 = scalar_lea.vmem %s3, 32
        %v672 = vld [vmem:[%s671] sm:$0xff]
        %v673 = vld [vmem:[%s671 + $0x8] sm:$0xff]
        %v674 = vld [vmem:[%s671 + $0x10] sm:$0xff]
        %v675 = vld [vmem:[%s671 + $0x18] sm:$0xff]
        %677 = vset.pattern.permute.xlu0 0
        %678 = vperm.xlu0 %677, %v672
        %v679 = vpop.permute.xlu0 %678
        %682 = vset.pattern.permute.xlu0 0
        %683 = vperm.xlu0 %682, %v673
        %v684 = vpop.permute.xlu0 %683
        %687 = vset.pattern.permute.xlu0 0
        %688 = vperm.xlu0 %687, %v674
        %v689 = vpop.permute.xlu0 %688
        %692 = vset.pattern.permute.xlu0 0
        %693 = vperm.xlu0 %692, %v675
        %v694 = vpop.permute.xlu0 %693
        %v697 = vsel %vm459, %v667, 0
        %v700 = vsel %vm459, %v668, 0
        %v703 = vsel %vm459, %v669, 0
        %v706 = vsel %vm459, %v670, 0
        %708 = vmatprep.subr.mxu0 0.0
        %709 = vmatpush1.msra.mxu0 0.0
        %710 = vmatprep.subr.mxu0 0.0
        %711 = vmatpush1.msra.mxu0 0.0
        %712 = vmatprep.subr.mxu0 0.0
        %713 = vmatpush1.msra.mxu0 0.0
        %714 = vmatprep.subr.mxu0 0.0
        %715 = vmatpush1.msra.mxu0 0.0
        %716 = vmatprep.subr.mxu0 0.0
        %717 = vmatpush1.msra.mxu0 0.0
        %718 = vmatprep.subr.mxu0 0.0
        %719 = vmatpush1.msra.mxu0 0.0
        %720 = vmatprep.subr.mxu0 0.0
        %721 = vmatpush1.msra.mxu0 0.0
        %722 = vmatprep.subr.mxu0 0.0
        %723 = vmatpush1.msra.mxu0 0.0
        %724 = vmatprep.subr.mxu0 0.0
        %725 = vmatpush1.msra.mxu0 0.0
        %726 = vmatprep.subr.mxu0 0.0
        %727 = vmatpush1.msra.mxu0 0.0
        %728 = vmatprep.subr.mxu0 0.0
        %729 = vmatpush1.msra.mxu0 0.0
        %730 = vmatprep.subr.mxu0 0.0
        %731 = vmatpush1.msra.mxu0 0.0
        %732 = vmatprep.subr.mxu0 %v663
        %733 = vmatpush1.msra.mxu0 %v662
        %734 = vmatprep.subr.mxu0 %v659
        %735 = vmatpush1.msra.mxu0 %v658
        %736 = vmatprep.subr.mxu0 %v655
        %737 = vmatpush1.msra.mxu0 %v654
        %738 = vmatprep.subr.mxu0 %v651
        %739 = vmatpush1.msra.mxu0 %v650
        %740 = vmatprep.subr.mxu0 0.0
        %741 = vmatpush2.msra.mxu0 0.0
        %742 = vmatprep.subr.mxu0 0.0
        %743 = vmatpush2.msra.mxu0 0.0
        %744 = vmatprep.subr.mxu0 0.0
        %745 = vmatpush2.msra.mxu0 0.0
        %746 = vmatprep.subr.mxu0 0.0
        %747 = vmatpush2.msra.mxu0 0.0
        %748 = vmatprep.subr.mxu0 0.0
        %749 = vmatpush2.msra.mxu0 0.0
        %750 = vmatprep.subr.mxu0 0.0
        %751 = vmatpush2.msra.mxu0 0.0
        %752 = vmatprep.subr.mxu0 0.0
        %753 = vmatpush2.msra.mxu0 0.0
        %754 = vmatprep.subr.mxu0 0.0
        %755 = vmatpush2.msra.mxu0 0.0
        %756 = vmatprep.subr.mxu0 0.0
        %757 = vmatpush2.msra.mxu0 0.0
        %758 = vmatprep.subr.mxu0 0.0
        %759 = vmatpush2.msra.mxu0 0.0
        %760 = vmatprep.subr.mxu0 0.0
        %761 = vmatpush2.msra.mxu0 0.0
        %762 = vmatprep.subr.mxu0 0.0
        %763 = vmatpush2.msra.mxu0 0.0
        %764 = vmatprep.subr.mxu0 0.0
        %765 = vmatpush2.msra.mxu0 0.0
        %766 = vmatprep.subr.mxu0 0.0
        %767 = vmatpush2.msra.mxu0 0.0
        %768 = vmatprep.subr.mxu0 0.0
        %769 = vmatpush2.msra.mxu0 0.0
        %770 = vmatprep.subr.mxu0 0.0
        %771 = vmatpush2.msra.mxu0 0.0
        %772 = vmatprep.mubr.f32.mxu0 0.0
        %773 = vmatmul.mubr.f32.gmra.mxu0 %v697
        %v774 = vpop.f32.mrf.mxu0
        %v775 = vadd.f32 %v679, %v774
        %v776 = vpop.f32.mrf.mxu0
        %v777 = vadd.f32 %v679, %v776
        %778 = vmatprep.mubr.f32.mxu0 0.0
        %779 = vmatmul.mubr.f32.gmra.mxu0 %v700
        %v780 = vpop.f32.mrf.mxu0
        %v781 = vadd.f32 %v684, %v780
        %v782 = vpop.f32.mrf.mxu0
        %v783 = vadd.f32 %v684, %v782
        %784 = vmatprep.mubr.f32.mxu0 0.0
        %785 = vmatmul.mubr.f32.gmra.mxu0 %v703
        %v786 = vpop.f32.mrf.mxu0
        %v787 = vadd.f32 %v689, %v786
        %v788 = vpop.f32.mrf.mxu0
        %v789 = vadd.f32 %v689, %v788
        %790 = vmatprep.mubr.f32.mxu0 0.0
        %791 = vmatmul.mubr.f32.gmra.mxu0 %v706
        %v792 = vpop.f32.mrf.mxu0
        %v793 = vadd.f32 %v694, %v792
        %v794 = vpop.f32.mrf.mxu0
        %v795 = vadd.f32 %v694, %v794
        %796 = vdwg.mxu0
        %797 = vmatprep.subr.mxu0 0.0
        %798 = vmatpush1.msra.mxu0 0.0
        %799 = vmatprep.subr.mxu0 0.0
        %800 = vmatpush1.msra.mxu0 0.0
        %801 = vmatprep.subr.mxu0 0.0
        %802 = vmatpush1.msra.mxu0 0.0
        %803 = vmatprep.subr.mxu0 0.0
        %804 = vmatpush1.msra.mxu0 0.0
        %805 = vmatprep.subr.mxu0 0.0
        %806 = vmatpush1.msra.mxu0 0.0
        %807 = vmatprep.subr.mxu0 0.0
        %808 = vmatpush1.msra.mxu0 0.0
        %809 = vmatprep.subr.mxu0 0.0
        %810 = vmatpush1.msra.mxu0 0.0
        %811 = vmatprep.subr.mxu0 0.0
        %812 = vmatpush1.msra.mxu0 0.0
        %813 = vmatprep.subr.mxu0 0.0
        %814 = vmatpush1.msra.mxu0 0.0
        %815 = vmatprep.subr.mxu0 0.0
        %816 = vmatpush1.msra.mxu0 0.0
        %817 = vmatprep.subr.mxu0 0.0
        %818 = vmatpush1.msra.mxu0 0.0
        %819 = vmatprep.subr.mxu0 0.0
        %820 = vmatpush1.msra.mxu0 0.0
        %821 = vmatprep.subr.mxu0 %v665
        %822 = vmatpush1.msra.mxu0 %v664
        %823 = vmatprep.subr.mxu0 %v661
        %824 = vmatpush1.msra.mxu0 %v660
        %825 = vmatprep.subr.mxu0 %v657
        %826 = vmatpush1.msra.mxu0 %v656
        %827 = vmatprep.subr.mxu0 %v653
        %828 = vmatpush1.msra.mxu0 %v652
        %829 = vmatprep.subr.mxu0 0.0
        %830 = vmatpush2.msra.mxu0 0.0
        %831 = vmatprep.subr.mxu0 0.0
        %832 = vmatpush2.msra.mxu0 0.0
        %833 = vmatprep.subr.mxu0 0.0
        %834 = vmatpush2.msra.mxu0 0.0
        %835 = vmatprep.subr.mxu0 0.0
        %836 = vmatpush2.msra.mxu0 0.0
        %837 = vmatprep.subr.mxu0 0.0
        %838 = vmatpush2.msra.mxu0 0.0
        %839 = vmatprep.subr.mxu0 0.0
        %840 = vmatpush2.msra.mxu0 0.0
        %841 = vmatprep.subr.mxu0 0.0
        %842 = vmatpush2.msra.mxu0 0.0
        %843 = vmatprep.subr.mxu0 0.0
        %844 = vmatpush2.msra.mxu0 0.0
        %845 = vmatprep.subr.mxu0 0.0
        %846 = vmatpush2.msra.mxu0 0.0
        %847 = vmatprep.subr.mxu0 0.0
        %848 = vmatpush2.msra.mxu0 0.0
        %849 = vmatprep.subr.mxu0 0.0
        %850 = vmatpush2.msra.mxu0 0.0
        %851 = vmatprep.subr.mxu0 0.0
        %852 = vmatpush2.msra.mxu0 0.0
        %853 = vmatprep.subr.mxu0 0.0
        %854 = vmatpush2.msra.mxu0 0.0
        %855 = vmatprep.subr.mxu0 0.0
        %856 = vmatpush2.msra.mxu0 0.0
        %857 = vmatprep.subr.mxu0 0.0
        %858 = vmatpush2.msra.mxu0 0.0
        %859 = vmatprep.subr.mxu0 0.0
        %860 = vmatpush2.msra.mxu0 0.0
        %861 = vmatprep.mubr.f32.mxu0 0.0
        %862 = vmatmul.mubr.f32.gmra.mxu0 %v697
        %v863 = vpop.f32.mrf.mxu0
        %v864 = vadd.f32 %v679, %v863
        %v865 = vpop.f32.mrf.mxu0
        %v866 = vadd.f32 %v679, %v865
        %867 = vmatprep.mubr.f32.mxu0 0.0
        %868 = vmatmul.mubr.f32.gmra.mxu0 %v700
        %v869 = vpop.f32.mrf.mxu0
        %v870 = vadd.f32 %v684, %v869
        %v871 = vpop.f32.mrf.mxu0
        %v872 = vadd.f32 %v684, %v871
        %873 = vmatprep.mubr.f32.mxu0 0.0
        %874 = vmatmul.mubr.f32.gmra.mxu0 %v703
        %v875 = vpop.f32.mrf.mxu0
        %v876 = vadd.f32 %v689, %v875
        %v877 = vpop.f32.mrf.mxu0
        %v878 = vadd.f32 %v689, %v877
        %879 = vmatprep.mubr.f32.mxu0 0.0
        %880 = vmatmul.mubr.f32.gmra.mxu0 %v706
        %v881 = vpop.f32.mrf.mxu0
        %v882 = vadd.f32 %v694, %v881
        %v883 = vpop.f32.mrf.mxu0
        %v884 = vadd.f32 %v694, %v883
        %885 = vdwg.mxu0
        %v886 = vtanh.pop %v775
        %v887 = vtanh.pop %v777
        %v888 = vtanh.pop %v864
        %v889 = vtanh.pop %v866
        %v890 = vtanh.pop %v781
        %v891 = vtanh.pop %v783
        %v892 = vtanh.pop %v870
        %v893 = vtanh.pop %v872
        %v894 = vtanh.pop %v787
        %v895 = vtanh.pop %v789
        %v896 = vtanh.pop %v876
        %v897 = vtanh.pop %v878
        %v898 = vtanh.pop %v793
        %v899 = vtanh.pop %v795
        %v900 = vtanh.pop %v882
        %v901 = vtanh.pop %v884
        %s902 = scalar_lea.vmem %s2, 64
        %v903 = vld [vmem:[%s902] sm:$0xff]
        %v904 = vld [vmem:[%s902 + $0x8] sm:$0xff]
        %v905 = vld [vmem:[%s902 + $0x10] sm:$0xff]
        %v906 = vld [vmem:[%s902 + $0x18] sm:$0xff]
        %s907 = scalar_lea.vmem %s3, 64
        %v908 = vld [vmem:[%s907] sm:$0xff]
        %v909 = vld [vmem:[%s907 + $0x8] sm:$0xff]
        %v910 = vld [vmem:[%s907 + $0x10] sm:$0xff]
        %v911 = vld [vmem:[%s907 + $0x18] sm:$0xff]
        %913 = vset.pattern.permute.xlu0 0
        %914 = vperm.xlu0 %913, %v908
        %v915 = vpop.permute.xlu0 %914
        %918 = vset.pattern.permute.xlu0 0
        %919 = vperm.xlu0 %918, %v909
        %v920 = vpop.permute.xlu0 %919
        %923 = vset.pattern.permute.xlu0 0
        %924 = vperm.xlu0 %923, %v910
        %v925 = vpop.permute.xlu0 %924
        %928 = vset.pattern.permute.xlu0 0
        %929 = vperm.xlu0 %928, %v911
        %v930 = vpop.permute.xlu0 %929
        %v933 = vsel %vm459, %v903, 0
        %v936 = vsel %vm459, %v904, 0
        %v939 = vsel %vm459, %v905, 0
        %v942 = vsel %vm459, %v906, 0
        %944 = vmatprep.subr.mxu0 0.0
        %945 = vmatpush1.msra.mxu0 0.0
        %946 = vmatprep.subr.mxu0 0.0
        %947 = vmatpush1.msra.mxu0 0.0
        %948 = vmatprep.subr.mxu0 0.0
        %949 = vmatpush1.msra.mxu0 0.0
        %950 = vmatprep.subr.mxu0 0.0
        %951 = vmatpush1.msra.mxu0 0.0
        %952 = vmatprep.subr.mxu0 0.0
        %953 = vmatpush1.msra.mxu0 0.0
        %954 = vmatprep.subr.mxu0 0.0
        %955 = vmatpush1.msra.mxu0 0.0
        %956 = vmatprep.subr.mxu0 0.0
        %957 = vmatpush1.msra.mxu0 0.0
        %958 = vmatprep.subr.mxu0 0.0
        %959 = vmatpush1.msra.mxu0 0.0
        %960 = vmatprep.subr.mxu0 0.0
        %961 = vmatpush1.msra.mxu0 0.0
        %962 = vmatprep.subr.mxu0 0.0
        %963 = vmatpush1.msra.mxu0 0.0
        %964 = vmatprep.subr.mxu0 0.0
        %965 = vmatpush1.msra.mxu0 0.0
        %966 = vmatprep.subr.mxu0 0.0
        %967 = vmatpush1.msra.mxu0 0.0
        %968 = vmatprep.subr.mxu0 %v899
        %969 = vmatpush1.msra.mxu0 %v898
        %970 = vmatprep.subr.mxu0 %v895
        %971 = vmatpush1.msra.mxu0 %v894
        %972 = vmatprep.subr.mxu0 %v891
        %973 = vmatpush1.msra.mxu0 %v890
        %974 = vmatprep.subr.mxu0 %v887
        %975 = vmatpush1.msra.mxu0 %v886
        %976 = vmatprep.subr.mxu0 0.0
        %977 = vmatpush2.msra.mxu0 0.0
        %978 = vmatprep.subr.mxu0 0.0
        %979 = vmatpush2.msra.mxu0 0.0
        %980 = vmatprep.subr.mxu0 0.0
        %981 = vmatpush2.msra.mxu0 0.0
        %982 = vmatprep.subr.mxu0 0.0
        %983 = vmatpush2.msra.mxu0 0.0
        %984 = vmatprep.subr.mxu0 0.0
        %985 = vmatpush2.msra.mxu0 0.0
        %986 = vmatprep.subr.mxu0 0.0
        %987 = vmatpush2.msra.mxu0 0.0
        %988 = vmatprep.subr.mxu0 0.0
        %989 = vmatpush2.msra.mxu0 0.0
        %990 = vmatprep.subr.mxu0 0.0
        %991 = vmatpush2.msra.mxu0 0.0
        %992 = vmatprep.subr.mxu0 0.0
        %993 = vmatpush2.msra.mxu0 0.0
        %994 = vmatprep.subr.mxu0 0.0
        %995 = vmatpush2.msra.mxu0 0.0
        %996 = vmatprep.subr.mxu0 0.0
        %997 = vmatpush2.msra.mxu0 0.0
        %998 = vmatprep.subr.mxu0 0.0
        %999 = vmatpush2.msra.mxu0 0.0
        %1000 = vmatprep.subr.mxu0 0.0
        %1001 = vmatpush2.msra.mxu0 0.0
        %1002 = vmatprep.subr.mxu0 0.0
        %1003 = vmatpush2.msra.mxu0 0.0
        %1004 = vmatprep.subr.mxu0 0.0
        %1005 = vmatpush2.msra.mxu0 0.0
        %1006 = vmatprep.subr.mxu0 0.0
        %1007 = vmatpush2.msra.mxu0 0.0
        %1008 = vmatprep.mubr.f32.mxu0 0.0
        %1009 = vmatmul.mubr.f32.gmra.mxu0 %v933
        %v1010 = vpop.f32.mrf.mxu0
        %v1011 = vadd.f32 %v915, %v1010
        %v1012 = vpop.f32.mrf.mxu0
        %v1013 = vadd.f32 %v915, %v1012
        %1014 = vmatprep.mubr.f32.mxu0 0.0
        %1015 = vmatmul.mubr.f32.gmra.mxu0 %v936
        %v1016 = vpop.f32.mrf.mxu0
        %v1017 = vadd.f32 %v920, %v1016
        %v1018 = vpop.f32.mrf.mxu0
        %v1019 = vadd.f32 %v920, %v1018
        %1020 = vmatprep.mubr.f32.mxu0 0.0
        %1021 = vmatmul.mubr.f32.gmra.mxu0 %v939
        %v1022 = vpop.f32.mrf.mxu0
        %v1023 = vadd.f32 %v925, %v1022
        %v1024 = vpop.f32.mrf.mxu0
        %v1025 = vadd.f32 %v925, %v1024
        %1026 = vmatprep.mubr.f32.mxu0 0.0
        %1027 = vmatmul.mubr.f32.gmra.mxu0 %v942
        %v1028 = vpop.f32.mrf.mxu0
        %v1029 = vadd.f32 %v930, %v1028
        %v1030 = vpop.f32.mrf.mxu0
        %v1031 = vadd.f32 %v930, %v1030
        %1032 = vdwg.mxu0
        %1033 = vmatprep.subr.mxu0 0.0
        %1034 = vmatpush1.msra.mxu0 0.0
        %1035 = vmatprep.subr.mxu0 0.0
        %1036 = vmatpush1.msra.mxu0 0.0
        %1037 = vmatprep.subr.mxu0 0.0
        %1038 = vmatpush1.msra.mxu0 0.0
        %1039 = vmatprep.subr.mxu0 0.0
        %1040 = vmatpush1.msra.mxu0 0.0
        %1041 = vmatprep.subr.mxu0 0.0
        %1042 = vmatpush1.msra.mxu0 0.0
        %1043 = vmatprep.subr.mxu0 0.0
        %1044 = vmatpush1.msra.mxu0 0.0
        %1045 = vmatprep.subr.mxu0 0.0
        %1046 = vmatpush1.msra.mxu0 0.0
        %1047 = vmatprep.subr.mxu0 0.0
        %1048 = vmatpush1.msra.mxu0 0.0
        %1049 = vmatprep.subr.mxu0 0.0
        %1050 = vmatpush1.msra.mxu0 0.0
        %1051 = vmatprep.subr.mxu0 0.0
        %1052 = vmatpush1.msra.mxu0 0.0
        %1053 = vmatprep.subr.mxu0 0.0
        %1054 = vmatpush1.msra.mxu0 0.0
        %1055 = vmatprep.subr.mxu0 0.0
        %1056 = vmatpush1.msra.mxu0 0.0
        %1057 = vmatprep.subr.mxu0 %v901
        %1058 = vmatpush1.msra.mxu0 %v900
        %1059 = vmatprep.subr.mxu0 %v897
        %1060 = vmatpush1.msra.mxu0 %v896
        %1061 = vmatprep.subr.mxu0 %v893
        %1062 = vmatpush1.msra.mxu0 %v892
        %1063 = vmatprep.subr.mxu0 %v889
        %1064 = vmatpush1.msra.mxu0 %v888
        %1065 = vmatprep.subr.mxu0 0.0
        %1066 = vmatpush2.msra.mxu0 0.0
        %1067 = vmatprep.subr.mxu0 0.0
        %1068 = vmatpush2.msra.mxu0 0.0
        %1069 = vmatprep.subr.mxu0 0.0
        %1070 = vmatpush2.msra.mxu0 0.0
        %1071 = vmatprep.subr.mxu0 0.0
        %1072 = vmatpush2.msra.mxu0 0.0
        %1073 = vmatprep.subr.mxu0 0.0
        %1074 = vmatpush2.msra.mxu0 0.0
        %1075 = vmatprep.subr.mxu0 0.0
        %1076 = vmatpush2.msra.mxu0 0.0
        %1077 = vmatprep.subr.mxu0 0.0
        %1078 = vmatpush2.msra.mxu0 0.0
        %1079 = vmatprep.subr.mxu0 0.0
        %1080 = vmatpush2.msra.mxu0 0.0
        %1081 = vmatprep.subr.mxu0 0.0
        %1082 = vmatpush2.msra.mxu0 0.0
        %1083 = vmatprep.subr.mxu0 0.0
        %1084 = vmatpush2.msra.mxu0 0.0
        %1085 = vmatprep.subr.mxu0 0.0
        %1086 = vmatpush2.msra.mxu0 0.0
        %1087 = vmatprep.subr.mxu0 0.0
        %1088 = vmatpush2.msra.mxu0 0.0
        %1089 = vmatprep.subr.mxu0 0.0
        %1090 = vmatpush2.msra.mxu0 0.0
        %1091 = vmatprep.subr.mxu0 0.0
        %1092 = vmatpush2.msra.mxu0 0.0
        %1093 = vmatprep.subr.mxu0 0.0
        %1094 = vmatpush2.msra.mxu0 0.0
        %1095 = vmatprep.subr.mxu0 0.0
        %1096 = vmatpush2.msra.mxu0 0.0
        %1097 = vmatprep.mubr.f32.mxu0 0.0
        %1098 = vmatmul.mubr.f32.gmra.mxu0 %v933
        %v1099 = vpop.f32.mrf.mxu0
        %v1100 = vadd.f32 %v915, %v1099
        %v1101 = vpop.f32.mrf.mxu0
        %v1102 = vadd.f32 %v915, %v1101
        %1103 = vmatprep.mubr.f32.mxu0 0.0
        %1104 = vmatmul.mubr.f32.gmra.mxu0 %v936
        %v1105 = vpop.f32.mrf.mxu0
        %v1106 = vadd.f32 %v920, %v1105
        %v1107 = vpop.f32.mrf.mxu0
        %v1108 = vadd.f32 %v920, %v1107
        %1109 = vmatprep.mubr.f32.mxu0 0.0
        %1110 = vmatmul.mubr.f32.gmra.mxu0 %v939
        %v1111 = vpop.f32.mrf.mxu0
        %v1112 = vadd.f32 %v925, %v1111
        %v1113 = vpop.f32.mrf.mxu0
        %v1114 = vadd.f32 %v925, %v1113
        %1115 = vmatprep.mubr.f32.mxu0 0.0
        %1116 = vmatmul.mubr.f32.gmra.mxu0 %v942
        %v1117 = vpop.f32.mrf.mxu0
        %v1118 = vadd.f32 %v930, %v1117
        %v1119 = vpop.f32.mrf.mxu0
        %v1120 = vadd.f32 %v930, %v1119
        %1121 = vdwg.mxu0
        %v1122 = vtanh.pop %v1011
        %v1123 = vtanh.pop %v1013
        %v1124 = vtanh.pop %v1100
        %v1125 = vtanh.pop %v1102
        %v1126 = vtanh.pop %v1017
        %v1127 = vtanh.pop %v1019
        %v1128 = vtanh.pop %v1106
        %v1129 = vtanh.pop %v1108
        %v1130 = vtanh.pop %v1023
        %v1131 = vtanh.pop %v1025
        %v1132 = vtanh.pop %v1112
        %v1133 = vtanh.pop %v1114
        %v1134 = vtanh.pop %v1029
        %v1135 = vtanh.pop %v1031
        %v1136 = vtanh.pop %v1118
        %v1137 = vtanh.pop %v1120
        %s1138 = scalar_lea.vmem %s2, 96
        %v1139 = vld [vmem:[%s1138] sm:$0xff]
        %v1140 = vld [vmem:[%s1138 + $0x8] sm:$0xff]
        %v1141 = vld [vmem:[%s1138 + $0x10] sm:$0xff]
        %v1142 = vld [vmem:[%s1138 + $0x18] sm:$0xff]
        %s1143 = scalar_lea.vmem %s3, 96
        %v1144 = vld [vmem:[%s1143] sm:$0xff]
        %v1145 = vld [vmem:[%s1143 + $0x8] sm:$0xff]
        %v1146 = vld [vmem:[%s1143 + $0x10] sm:$0xff]
        %v1147 = vld [vmem:[%s1143 + $0x18] sm:$0xff]
        %1149 = vset.pattern.permute.xlu0 0
        %1150 = vperm.xlu0 %1149, %v1144
        %v1151 = vpop.permute.xlu0 %1150
        %1154 = vset.pattern.permute.xlu0 0
        %1155 = vperm.xlu0 %1154, %v1145
        %v1156 = vpop.permute.xlu0 %1155
        %1158 = vset.pattern.permute.xlu0 0
        %1159 = vperm.xlu0 %1158, %v1146
        %v1160 = vpop.permute.xlu0 %1159
        %1162 = vset.pattern.permute.xlu0 0
        %1163 = vperm.xlu0 %1162, %v1147
        %v1164 = vpop.permute.xlu0 %1163
        %v1166 = vsel %vm459, %v1139, 0
        %v1169 = vsel %vm459, %v1140, 0
        %v1172 = vsel %vm459, %v1141, 0
        %v1175 = vsel %vm459, %v1142, 0
        %1177 = vmatprep.subr.mxu0 0.0
        %1178 = vmatpush1.msra.mxu0 0.0
        %1179 = vmatprep.subr.mxu0 0.0
        %1180 = vmatpush1.msra.mxu0 0.0
        %1181 = vmatprep.subr.mxu0 0.0
        %1182 = vmatpush1.msra.mxu0 0.0
        %1183 = vmatprep.subr.mxu0 0.0
        %1184 = vmatpush1.msra.mxu0 0.0
        %1185 = vmatprep.subr.mxu0 0.0
        %1186 = vmatpush1.msra.mxu0 0.0
        %1187 = vmatprep.subr.mxu0 0.0
        %1188 = vmatpush1.msra.mxu0 0.0
        %1189 = vmatprep.subr.mxu0 0.0
        %1190 = vmatpush1.msra.mxu0 0.0
        %1191 = vmatprep.subr.mxu0 0.0
        %1192 = vmatpush1.msra.mxu0 0.0
        %1193 = vmatprep.subr.mxu0 0.0
        %1194 = vmatpush1.msra.mxu0 0.0
        %1195 = vmatprep.subr.mxu0 0.0
        %1196 = vmatpush1.msra.mxu0 0.0
        %1197 = vmatprep.subr.mxu0 0.0
        %1198 = vmatpush1.msra.mxu0 0.0
        %1199 = vmatprep.subr.mxu0 0.0
        %1200 = vmatpush1.msra.mxu0 0.0
        %1201 = vmatprep.subr.mxu0 %v1135
        %1202 = vmatpush1.msra.mxu0 %v1134
        %1203 = vmatprep.subr.mxu0 %v1131
        %1204 = vmatpush1.msra.mxu0 %v1130
        %1205 = vmatprep.subr.mxu0 %v1127
        %1206 = vmatpush1.msra.mxu0 %v1126
        %1207 = vmatprep.subr.mxu0 %v1123
        %1208 = vmatpush1.msra.mxu0 %v1122
        %1209 = vmatprep.subr.mxu0 0.0
        %1210 = vmatpush2.msra.mxu0 0.0
        %1211 = vmatprep.subr.mxu0 0.0
        %1212 = vmatpush2.msra.mxu0 0.0
        %1213 = vmatprep.subr.mxu0 0.0
        %1214 = vmatpush2.msra.mxu0 0.0
        %1215 = vmatprep.subr.mxu0 0.0
        %1216 = vmatpush2.msra.mxu0 0.0
        %1217 = vmatprep.subr.mxu0 0.0
        %1218 = vmatpush2.msra.mxu0 0.0
        %1219 = vmatprep.subr.mxu0 0.0
        %1220 = vmatpush2.msra.mxu0 0.0
        %1221 = vmatprep.subr.mxu0 0.0
        %1222 = vmatpush2.msra.mxu0 0.0
        %1223 = vmatprep.subr.mxu0 0.0
        %1224 = vmatpush2.msra.mxu0 0.0
        %1225 = vmatprep.subr.mxu0 0.0
        %1226 = vmatpush2.msra.mxu0 0.0
        %1227 = vmatprep.subr.mxu0 0.0
        %1228 = vmatpush2.msra.mxu0 0.0
        %1229 = vmatprep.subr.mxu0 0.0
        %1230 = vmatpush2.msra.mxu0 0.0
        %1231 = vmatprep.subr.mxu0 0.0
        %1232 = vmatpush2.msra.mxu0 0.0
        %1233 = vmatprep.subr.mxu0 0.0
        %1234 = vmatpush2.msra.mxu0 0.0
        %1235 = vmatprep.subr.mxu0 0.0
        %1236 = vmatpush2.msra.mxu0 0.0
        %1237 = vmatprep.subr.mxu0 0.0
        %1238 = vmatpush2.msra.mxu0 0.0
        %1239 = vmatprep.subr.mxu0 0.0
        %1240 = vmatpush2.msra.mxu0 0.0
        %1241 = vmatprep.mubr.f32.mxu0 0.0
        %1242 = vmatmul.mubr.f32.gmra.mxu0 %v1166
        %v1243 = vpop.f32.mrf.mxu0
        %v1244 = vadd.f32 %v1151, %v1243
        %v1245 = vpop.f32.mrf.mxu0
        %v1246 = vadd.f32 %v1151, %v1245
        %1247 = vmatprep.mubr.f32.mxu0 0.0
        %1248 = vmatmul.mubr.f32.gmra.mxu0 %v1169
        %v1249 = vpop.f32.mrf.mxu0
        %v1250 = vpop.f32.mrf.mxu0
        %1251 = vmatprep.mubr.f32.mxu0 0.0
        %1252 = vmatmul.mubr.f32.gmra.mxu0 %v1172
        %v1253 = vpop.f32.mrf.mxu0
        %v1254 = vpop.f32.mrf.mxu0
        %1255 = vmatprep.mubr.f32.mxu0 0.0
        %1256 = vmatmul.mubr.f32.gmra.mxu0 %v1175
        %v1257 = vpop.f32.mrf.mxu0
        %v1258 = vpop.f32.mrf.mxu0
        %1259 = vdwg.mxu0
        %1260 = vmatprep.subr.mxu0 0.0
        %1261 = vmatpush1.msra.mxu0 0.0
        %1262 = vmatprep.subr.mxu0 0.0
        %1263 = vmatpush1.msra.mxu0 0.0
        %1264 = vmatprep.subr.mxu0 0.0
        %1265 = vmatpush1.msra.mxu0 0.0
        %1266 = vmatprep.subr.mxu0 0.0
        %1267 = vmatpush1.msra.mxu0 0.0
        %1268 = vmatprep.subr.mxu0 0.0
        %1269 = vmatpush1.msra.mxu0 0.0
        %1270 = vmatprep.subr.mxu0 0.0
        %1271 = vmatpush1.msra.mxu0 0.0
        %1272 = vmatprep.subr.mxu0 0.0
        %1273 = vmatpush1.msra.mxu0 0.0
        %1274 = vmatprep.subr.mxu0 0.0
        %1275 = vmatpush1.msra.mxu0 0.0
        %1276 = vmatprep.subr.mxu0 0.0
        %1277 = vmatpush1.msra.mxu0 0.0
        %1278 = vmatprep.subr.mxu0 0.0
        %1279 = vmatpush1.msra.mxu0 0.0
        %1280 = vmatprep.subr.mxu0 0.0
        %1281 = vmatpush1.msra.mxu0 0.0
        %1282 = vmatprep.subr.mxu0 0.0
        %1283 = vmatpush1.msra.mxu0 0.0
        %1284 = vmatprep.subr.mxu0 %v1137
        %1285 = vmatpush1.msra.mxu0 %v1136
        %1286 = vmatprep.subr.mxu0 %v1133
        %1287 = vmatpush1.msra.mxu0 %v1132
        %1288 = vmatprep.subr.mxu0 %v1129
        %1289 = vmatpush1.msra.mxu0 %v1128
        %1290 = vmatprep.subr.mxu0 %v1125
        %1291 = vmatpush1.msra.mxu0 %v1124
        %1292 = vmatprep.subr.mxu0 0.0
        %1293 = vmatpush2.msra.mxu0 0.0
        %1294 = vmatprep.subr.mxu0 0.0
        %1295 = vmatpush2.msra.mxu0 0.0
        %1296 = vmatprep.subr.mxu0 0.0
        %1297 = vmatpush2.msra.mxu0 0.0
        %1298 = vmatprep.subr.mxu0 0.0
        %1299 = vmatpush2.msra.mxu0 0.0
        %1300 = vmatprep.subr.mxu0 0.0
        %1301 = vmatpush2.msra.mxu0 0.0
        %1302 = vmatprep.subr.mxu0 0.0
        %1303 = vmatpush2.msra.mxu0 0.0
        %1304 = vmatprep.subr.mxu0 0.0
        %1305 = vmatpush2.msra.mxu0 0.0
        %1306 = vmatprep.subr.mxu0 0.0
        %1307 = vmatpush2.msra.mxu0 0.0
        %1308 = vmatprep.subr.mxu0 0.0
        %1309 = vmatpush2.msra.mxu0 0.0
        %1310 = vmatprep.subr.mxu0 0.0
        %1311 = vmatpush2.msra.mxu0 0.0
        %1312 = vmatprep.subr.mxu0 0.0
        %1313 = vmatpush2.msra.mxu0 0.0
        %1314 = vmatprep.subr.mxu0 0.0
        %1315 = vmatpush2.msra.mxu0 0.0
        %1316 = vmatprep.subr.mxu0 0.0
        %1317 = vmatpush2.msra.mxu0 0.0
        %1318 = vmatprep.subr.mxu0 0.0
        %1319 = vmatpush2.msra.mxu0 0.0
        %1320 = vmatprep.subr.mxu0 0.0
        %1321 = vmatpush2.msra.mxu0 0.0
        %1322 = vmatprep.subr.mxu0 0.0
        %1323 = vmatpush2.msra.mxu0 0.0
        %1324 = vmatprep.mubr.f32.mxu0 0.0
        %1325 = vmatmul.mubr.f32.gmra.mxu0 %v1166
        %v1326 = vpop.f32.mrf.mxu0
        %v1327 = vadd.f32 %v1151, %v1326
        %v1328 = vpop.f32.mrf.mxu0
        %v1329 = vadd.f32 %v1151, %v1328
        %1330 = vmatprep.mubr.f32.mxu0 0.0
        %1331 = vmatmul.mubr.f32.gmra.mxu0 %v1169
        %v1332 = vpop.f32.mrf.mxu0
        %v1333 = vpop.f32.mrf.mxu0
        %1334 = vmatprep.mubr.f32.mxu0 0.0
        %1335 = vmatmul.mubr.f32.gmra.mxu0 %v1172
        %v1336 = vpop.f32.mrf.mxu0
        %v1337 = vpop.f32.mrf.mxu0
        %1338 = vmatprep.mubr.f32.mxu0 0.0
        %1339 = vmatmul.mubr.f32.gmra.mxu0 %v1175
        %v1340 = vpop.f32.mrf.mxu0
        %v1341 = vpop.f32.mrf.mxu0
        %1342 = vdwg.mxu0
        %v1347 = vcombine.low %v1244, %v1246
        %v1348 = vcombine.low %v1327, %v1329
        %v1350 = vunpack.c.l.s4 1966171168
        %v1351 = vunpack.c.0.s8 %v1350
        %v1352 = vlaneseq
        %v1353 = vshrl.u32 %v1352, 7
        %v1354 = vsub.s32 %v1351, %v1353
        %v1355 = vrot.slane %v1347, %v1354
        %v1357 = vunpack.c.l.s4 1966171168
        %v1358 = vunpack.c.0.s8 %v1357
        %v1359 = vlaneseq
        %v1360 = vshrl.u32 %v1359, 7
        %v1361 = vsub.s32 %v1358, %v1360
        %v1362 = vrot.slane %v1348, %v1361
        %v1363 = vcombine.low %v1355, %v1362
        %v1365 = vunpack.c.l.s4 1966171168
        %v1366 = vunpack.c.0.s8 %v1365
        %v1367 = vlaneseq
        %v1368 = vshrl.u32 %v1367, 7
        %v1369 = vsub.s32 %v1366, %v1368
        %v1370 = vrot.slane %v1363, %v1369
        %v1372 = vlaneseq
        %vm1373 = vcmp.ge.s32.totalorder %v1372, 0
        %vm1374 = vcmp.lt.s32.totalorder %v1372, 512
        %vm1375 = vmand %vm1373, %vm1374
        %1376 = vst.msk [vmem:[%s213] sm:$0xf] %vm1375, %v1370
        %s1377 = sand.u32 %s118, 1
        %s1378 = scalar_lea.sflag [#allocation4], %s1377
        %s1379 = sand.u32 %s118, 1
        %s1380 = smul.addr %s1379, 4
        %s1381 = scalar_lea.vmem [#allocation5], %s1380
        // Predicated region
        $region41: #{tpu_custom_call.1} parent=35 // pred_check
          %p1382 = pneg %p128
        $region42: #{tpu_custom_call.1} parent=35 // pred_check_branch
          %1384 = sbr.rel (%p1382) target = $region44
        $region43: #{tpu_custom_call.1} parent=35 // pred_region
          %s1385 = smul.u32 4, %s21
          %s1387 = ssub.s32 64, 64
          %1388 = vsyncadd %s1378, %s1387
          %s1389 = smul.addr %s1385, 16
          %s1390 = scalar_lea.hbm %s4, %s1389
          %s1392 = sshll.u32 %s1381, 4
          %s1393 = int_to_ptr.vmem [resolvable:$true] %s1392
          %1395 = dma.vmem_to_hbm [thread:$0]  %s1393, 64, %s1390, %s1378
        $region44: #{tpu_custom_call.1} parent=35 // pred_fallthru
          _
      $region36: #{tpu_custom_call.1} parent=5 // pred_fallthru
        _
      %p1396 = scmp.le.s32.totalorder 2, %s16
      // Predicated region
      $region45: #{tpu_custom_call.1} parent=5 // pred_check
        %p1397 = pneg %p1396
      $region46: #{tpu_custom_call.1} parent=5 // pred_check_branch
        %1399 = sbr.rel (%p1397) target = $region48
      $region47: #{tpu_custom_call.1} parent=5 // pred_region
        %s1400 = ssub.s32 %s16, 2
        // Predicated region
        $region49: #{tpu_custom_call.1} parent=47 // pred_check
          %p1401 = pneg %p134
        $region50: #{tpu_custom_call.1} parent=47 // pred_check_branch
          %1403 = sbr.rel (%p1401) target = $region52
        $region51: #{tpu_custom_call.1} parent=47 // pred_region
          %s1404 = sand.u32 %s119, 1
          %s1405 = scalar_lea.sflag [#allocation4], %s1404
          %s1406 = sand.u32 %s119, 1
          %s1407 = smul.addr %s1406, 4
          %s1408 = scalar_lea.vmem [#allocation5], %s1407
          %1409 = dma.done %s1405, 64
        $region52: #{tpu_custom_call.1} parent=47 // pred_fallthru
          _
      $region48: #{tpu_custom_call.1} parent=5 // pred_fallthru
        _
    $region6: #{tpu_custom_call.1} parent=1 // loop_footer
      %s20 = sadd.s32 1, %s16
    $region7: #{tpu_custom_call.1} parent=1 // loop_footer_branch
      %15 = sbr.rel target = $region3
    $region8: #{tpu_custom_call.1} parent=1 // loop_exit
      _
    %1410 = vsyncpa [#allocation3], 1
    %s1411 = scalar_lea.sflag [#allocation3], 1
    %1412 = vsyncpa %s1411, 1
    %1413 = vsyncpa [#allocation4], 1
    %s1414 = scalar_lea.sflag [#allocation4], 1
    %1415 = vsyncpa %s1414, 1

</llo_original>
